<compile_context>
chip_gen: v5e
topology: v5e:2x2
jax: 0.10.0
libtpu: 0.0.40
codegen_flags: <defaults>
</compile_context>

<pallas_src>
import jax
import jax.numpy as jnp
from jax.experimental import pallas as pl
from jax.experimental.pallas import tpu as pltpu


def _round_up(x, m):
    return ((x + m - 1) // m) * m


def _pad2(x, rows, cols):
    return jnp.pad(x, ((0, rows - x.shape[0]), (0, cols - x.shape[1])))


def _env_model_kernel(s_ref, a_ref, w1s_ref, w1a_ref, b1_ref,
                      w2_ref, b2_ref, w3_ref, b3_ref, out_ref):
    # Read each bias exactly once; (1, N) rows broadcast over the batch tile.
    b1 = b1_ref[...]
    b2 = b2_ref[...]
    b3 = b3_ref[...]

    # bf16 operands for the MXU; f32 accumulation and f32 elementwise everywhere.
    s = s_ref[...].astype(jnp.bfloat16)
    a = a_ref[...].astype(jnp.bfloat16)

    # Layer 1: split-K linear (replaces concat([state, action], 1) @ W1) + ReLU.
    h1 = jnp.dot(s, w1s_ref[...], preferred_element_type=jnp.float32)
    h1 = h1 + jnp.dot(a, w1a_ref[...], preferred_element_type=jnp.float32)
    h1 = jnp.maximum(h1 + b1, 0.0)

    # Layer 2: Linear + ReLU.
    h2 = jnp.dot(h1.astype(jnp.bfloat16), w2_ref[...],
                 preferred_element_type=jnp.float32)
    h2 = jnp.maximum(h2 + b2, 0.0)

    # Layer 3: Linear (no activation), stored at the true output width O (no lane padding).
    y = jnp.dot(h2.astype(jnp.bfloat16), w3_ref[...],
                preferred_element_type=jnp.float32)
    out_ref[...] = (y + b3).astype(out_ref.dtype)


def prepare_params(params, state_dim):
    """One-time weight preparation (split / pad / bf16 cast), hoisted out of the forward.

    params: dict with w1 (S+A, H), b1 (H,), w2 (H, H), b2 (H,), w3 (H, S), b3 (S,)
            (weights stored transposed vs. PyTorch, i.e. (in, out)).
    """
    w1 = jnp.asarray(params["w1"], jnp.float32)
    in_dim, H = w1.shape
    S = state_dim
    A = in_dim - S
    O = params["w3"].shape[1]
    H_pad = _round_up(H, 128)  # lane-dense hidden intermediates

    return {
        "w1_s": _pad2(w1[:S, :], S, H_pad).astype(jnp.bfloat16),
        "w1_a": _pad2(w1[S:, :], A, H_pad).astype(jnp.bfloat16),
        "b1": _pad2(jnp.asarray(params["b1"], jnp.float32).reshape(1, -1), 1, H_pad),
        "w2": _pad2(jnp.asarray(params["w2"], jnp.float32), H_pad, H_pad).astype(jnp.bfloat16),
        "b2": _pad2(jnp.asarray(params["b2"], jnp.float32).reshape(1, -1), 1, H_pad),
        "w3": _pad2(jnp.asarray(params["w3"], jnp.float32), H_pad, O).astype(jnp.bfloat16),
        "b3": jnp.asarray(params["b3"], jnp.float32).reshape(1, -1),   # (1, O), f32
    }


def _vmem_estimate_bytes(TB, S, A, H_pad, O):
    in_b = 2 * TB * (S + A) * 4          # double-buffered f32 input tiles
    out_b = 2 * TB * O * 4               # double-buffered f32 output tiles
    tmp_b = 2 * TB * H_pad * 4           # h1 + h2 f32 intermediates
    w_b = 2 * (((S + A) * H_pad + H_pad * H_pad + H_pad * O) * 2
               + (2 * H_pad + O) * 4)    # bf16 weights + f32 biases (buffered)
    return in_b + out_b + tmp_b + w_b


def environment_model_forward(state, action, prep, *, block_batch=8192):
    """Pallas forward pass of EnvironmentModel.

    state:  (B, state_dim)  float32
    action: (B, action_dim) float32
    prep:   output of prepare_params()
    returns predicted next state (B, state_dim), float32.
    """
    B, S = state.shape
    _, A = action.shape
    H_pad = prep["w2"].shape[0]
    O = prep["w3"].shape[1]

    # Batch tile: always a multiple of 8, capped near block_batch, and split so the grid
    # has at least 2 steps once the batch is big enough (both v7x TensorCores get work).
    bb = max(8, _round_up(int(block_batch), 8))
    TB = _round_up(pl.cdiv(B, 2 * max(1, pl.cdiv(B, 2 * bb))), 8)
    TB = min(TB, _round_up(B, 8))
    n_blocks = pl.cdiv(B, TB)

    # NOTE: no batch padding. The ragged tail tile reads out of bounds (undefined rows) but
    # those rows only feed output rows past B, which Pallas drops on store.
    state_p = state.astype(jnp.float32)
    action_p = action.astype(jnp.float32)

    row = lambda i: (i, 0)      # batch-tiled arrays
    const = lambda i: (0, 0)    # VMEM-resident weights / biases (never re-DMA'd)

    flops = 2 * B * ((S + A) * H_pad + H_pad * H_pad + H_pad * O)
    bytes_accessed = (B * (S + A + O) * 4
                      + ((S + A) * H_pad + H_pad * H_pad + H_pad * O) * 2
                      + (2 * H_pad + O) * 4)
    vmem_limit = int(min(48 * 1024 * 1024,
                         max(32 * 1024 * 1024,
                             2 * _vmem_estimate_bytes(TB, S, A, H_pad, O))))

    out = pl.pallas_call(
        _env_model_kernel,
        out_shape=jax.ShapeDtypeStruct((B, O), jnp.float32),
        grid=(n_blocks,),
        in_specs=[
            pl.BlockSpec((TB, S), row),          # state tile
            pl.BlockSpec((TB, A), row),          # action tile
            pl.BlockSpec((S, H_pad), const),     # w1 (state half)
            pl.BlockSpec((A, H_pad), const),     # w1 (action half)
            pl.BlockSpec((1, H_pad), const),     # b1
            pl.BlockSpec((H_pad, H_pad), const), # w2
            pl.BlockSpec((1, H_pad), const),     # b2
            pl.BlockSpec((H_pad, O), const),     # w3 (true output width)
            pl.BlockSpec((1, O), const),         # b3
        ],
        out_specs=pl.BlockSpec((TB, O), row),
        compiler_params=pltpu.CompilerParams(
            dimension_semantics=("parallel",),   # shard batch tiles across TCs
            vmem_limit_bytes=vmem_limit),
        cost_estimate=pl.CostEstimate(flops=flops, transcendentals=0,
                                      bytes_accessed=bytes_accessed),
    )(state_p, action_p, prep["w1_s"], prep["w1_a"], prep["b1"],
      prep["w2"], prep["b2"], prep["w3"], prep["b3"])

    return out


def init_params(key, state_dim, action_dim, hidden_dim=64):
    """Deterministic init mimicking nn.Linear's U(-1/sqrt(fan_in), 1/sqrt(fan_in))."""
    in_dim = state_dim + action_dim
    keys = jax.random.split(key, 6)

    def lin(kw, kb, fan_in, fan_out):
        bound = 1.0 / jnp.sqrt(fan_in)
        w = jax.random.uniform(kw, (fan_in, fan_out), jnp.float32, -bound, bound)
        b = jax.random.uniform(kb, (fan_out,), jnp.float32, -bound, bound)
        return w, b

    w1, b1 = lin(keys[0], keys[1], in_dim, hidden_dim)
    w2, b2 = lin(keys[2], keys[3], hidden_dim, hidden_dim)
    w3, b3 = lin(keys[4], keys[5], hidden_dim, state_dim)
    return {"w1": w1, "b1": b1, "w2": w2, "b2": b2, "w3": w3, "b3": b3}


def _reference_forward(state, action, params):
    x = jnp.concatenate([state, action], axis=1)
    h = jnp.maximum(x @ params["w1"] + params["b1"], 0.0)
    h = jnp.maximum(h @ params["w2"] + params["b2"], 0.0)
    return h @ params["w3"] + params["b3"]


if __name__ == "__main__":
    fwd = jax.jit(environment_model_forward, static_argnames=("block_batch",))

    # --- Test 1: tiny shapes matching the module's forward (single grid step). ---
    B, state_dim, action_dim, hidden_dim = 2, 8, 4, 32
    key = jax.random.PRNGKey(0)
    k_params, k_state, k_action, k2 = jax.random.split(key, 4)

    params = init_params(k_params, state_dim, action_dim, hidden_dim)
    prep = prepare_params(params, state_dim)           # one-time weight prep
    state = jax.random.normal(k_state, (B, state_dim), jnp.float32)
    action = jax.random.normal(k_action, (B, action_dim), jnp.float32)

    out = jax.block_until_ready(fwd(state, action, prep))
    ref = _reference_forward(state, action, params)
    assert out.shape == (B, state_dim)
    # bf16 MXU operands -> looser tolerance than pure-f32.
    assert jnp.allclose(out, ref, atol=3e-2, rtol=3e-2)

    # --- Test 2: multi-tile grid with a ragged batch (exercises the OOB tail tile). ---
    B2, sd2, ad2, hd2 = 300, 8, 4, 64
    kp2, ks2, ka2 = jax.random.split(k2, 3)
    params2 = init_params(kp2, sd2, ad2, hd2)
    prep2 = prepare_params(params2, sd2)
    state2 = jax.random.normal(ks2, (B2, sd2), jnp.float32)
    action2 = jax.random.normal(ka2, (B2, ad2), jnp.float32)

    out2 = jax.block_until_ready(fwd(state2, action2, prep2, block_batch=128))
    ref2 = _reference_forward(state2, action2, params2)
    assert out2.shape == (B2, sd2)
    assert jnp.allclose(out2, ref2, atol=3e-2, rtol=3e-2)

    # TODO(synk): the module's train() (MSELoss + Adam optimizer step) is host-side
    # training logic, not part of the forward pass, so it is intentionally not kernelized.
    print("KERNEL_OK")
</pallas_src>

<mosaic_0001>
module attributes {stable_mosaic.version = 11 : i64} {
  func.func @_env_model_kernel(%arg0: i32, %arg1: memref<8x8xf32, #tpu.memory_space<vmem>>, %arg2: memref<8x4xf32, #tpu.memory_space<vmem>>, %arg3: memref<8x128xbf16, #tpu.memory_space<vmem>>, %arg4: memref<4x128xbf16, #tpu.memory_space<vmem>>, %arg5: memref<1x128xf32, #tpu.memory_space<vmem>>, %arg6: memref<128x128xbf16, #tpu.memory_space<vmem>>, %arg7: memref<1x128xf32, #tpu.memory_space<vmem>>, %arg8: memref<128x8xbf16, #tpu.memory_space<vmem>>, %arg9: memref<1x8xf32, #tpu.memory_space<vmem>>, %arg10: memref<8x8xf32, #tpu.memory_space<vmem>>) attributes {dimension_semantics = [#tpu.dimension_semantics<parallel>], iteration_bounds = array<i64: 1>, scalar_prefetch = 0 : i64, scratch_operands = 0 : i64, tpu.core_type = #tpu.core_type<tc>, window_params = [{transform_indices = @transform_0, window_bounds = array<i64: 8, 8>}, {transform_indices = @transform_1, window_bounds = array<i64: 8, 4>}, {pipeline_mode = #tpu.pipeline_mode<synchronous>, transform_indices = @transform_2, window_bounds = array<i64: 8, 128>}, {pipeline_mode = #tpu.pipeline_mode<synchronous>, transform_indices = @transform_3, window_bounds = array<i64: 4, 128>}, {pipeline_mode = #tpu.pipeline_mode<synchronous>, transform_indices = @transform_4, window_bounds = array<i64: 1, 128>}, {pipeline_mode = #tpu.pipeline_mode<synchronous>, transform_indices = @transform_5, window_bounds = array<i64: 128, 128>}, {pipeline_mode = #tpu.pipeline_mode<synchronous>, transform_indices = @transform_6, window_bounds = array<i64: 1, 128>}, {pipeline_mode = #tpu.pipeline_mode<synchronous>, transform_indices = @transform_7, window_bounds = array<i64: 128, 8>}, {pipeline_mode = #tpu.pipeline_mode<synchronous>, transform_indices = @transform_8, window_bounds = array<i64: 1, 8>}, {transform_indices = @transform_9, window_bounds = array<i64: 8, 8>}]} {
    %c0 = arith.constant 0 : index
    %c0_0 = arith.constant 0 : index
    %0 = vector.load %arg5[%c0, %c0_0] : memref<1x128xf32, #tpu.memory_space<vmem>>, vector<1x128xf32>
    %c0_1 = arith.constant 0 : index
    %c0_2 = arith.constant 0 : index
    %1 = vector.load %arg7[%c0_1, %c0_2] : memref<1x128xf32, #tpu.memory_space<vmem>>, vector<1x128xf32>
    %c0_3 = arith.constant 0 : index
    %c0_4 = arith.constant 0 : index
    %2 = vector.load %arg9[%c0_3, %c0_4] : memref<1x8xf32, #tpu.memory_space<vmem>>, vector<1x8xf32>
    %c0_5 = arith.constant 0 : index
    %c0_6 = arith.constant 0 : index
    %3 = vector.load %arg1[%c0_5, %c0_6] : memref<8x8xf32, #tpu.memory_space<vmem>>, vector<8x8xf32>
    %4 = arith.truncf %3 : vector<8x8xf32> to vector<8x8xbf16>
    %c0_7 = arith.constant 0 : index
    %c0_8 = arith.constant 0 : index
    %5 = vector.load %arg2[%c0_7, %c0_8] : memref<8x4xf32, #tpu.memory_space<vmem>>, vector<8x4xf32>
    %6 = arith.truncf %5 : vector<8x4xf32> to vector<8x4xbf16>
    %c0_9 = arith.constant 0 : index
    %c0_10 = arith.constant 0 : index
    %7 = vector.load %arg3[%c0_9, %c0_10] : memref<8x128xbf16, #tpu.memory_space<vmem>>, vector<8x128xbf16>
    %cst = arith.constant dense<0.000000e+00> : vector<8x128xf32>
    %8 = tpu.matmul %4, %7, %cst {dimension_numbers = #tpu.dot_dimension_numbers<[1], [0], [0], [1], [0, 0, 1, 1], [], []>} : vector<8x8xbf16>, vector<8x128xbf16>, vector<8x128xf32> -> vector<8x128xf32>
    %c0_11 = arith.constant 0 : index
    %c0_12 = arith.constant 0 : index
    %9 = vector.load %arg4[%c0_11, %c0_12] : memref<4x128xbf16, #tpu.memory_space<vmem>>, vector<4x128xbf16>
    %cst_13 = arith.constant dense<0.000000e+00> : vector<8x128xf32>
    %10 = tpu.matmul %6, %9, %cst_13 {dimension_numbers = #tpu.dot_dimension_numbers<[1], [0], [0], [1], [0, 0, 1, 1], [], []>} : vector<8x4xbf16>, vector<4x128xbf16>, vector<8x128xf32> -> vector<8x128xf32>
    %11 = arith.addf %8, %10 : vector<8x128xf32>
    %12 = vector.broadcast %0 : vector<1x128xf32> to vector<8x128xf32>
    %13 = arith.addf %11, %12 : vector<8x128xf32>
    %cst_14 = arith.constant 0.000000e+00 : f32
    %14 = vector.broadcast %cst_14 : f32 to vector<8x128xf32>
    %15 = arith.maximumf %13, %14 : vector<8x128xf32>
    %16 = arith.truncf %15 : vector<8x128xf32> to vector<8x128xbf16>
    %c0_15 = arith.constant 0 : index
    %c0_16 = arith.constant 0 : index
    %17 = vector.load %arg6[%c0_15, %c0_16] : memref<128x128xbf16, #tpu.memory_space<vmem>>, vector<128x128xbf16>
    %cst_17 = arith.constant dense<0.000000e+00> : vector<8x128xf32>
    %18 = tpu.matmul %16, %17, %cst_17 {dimension_numbers = #tpu.dot_dimension_numbers<[1], [0], [0], [1], [0, 0, 1, 1], [], []>} : vector<8x128xbf16>, vector<128x128xbf16>, vector<8x128xf32> -> vector<8x128xf32>
    %19 = vector.broadcast %1 : vector<1x128xf32> to vector<8x128xf32>
    %20 = arith.addf %18, %19 : vector<8x128xf32>
    %cst_18 = arith.constant 0.000000e+00 : f32
    %21 = vector.broadcast %cst_18 : f32 to vector<8x128xf32>
    %22 = arith.maximumf %20, %21 : vector<8x128xf32>
    %23 = arith.truncf %22 : vector<8x128xf32> to vector<8x128xbf16>
    %c0_19 = arith.constant 0 : index
    %c0_20 = arith.constant 0 : index
    %24 = vector.load %arg8[%c0_19, %c0_20] : memref<128x8xbf16, #tpu.memory_space<vmem>>, vector<128x8xbf16>
    %cst_21 = arith.constant dense<0.000000e+00> : vector<8x8xf32>
    %25 = tpu.matmul %23, %24, %cst_21 {dimension_numbers = #tpu.dot_dimension_numbers<[1], [0], [0], [1], [0, 0, 1, 1], [], []>} : vector<8x128xbf16>, vector<128x8xbf16>, vector<8x8xf32> -> vector<8x8xf32>
    %26 = vector.broadcast %2 : vector<1x8xf32> to vector<8x8xf32>
    %27 = arith.addf %25, %26 : vector<8x8xf32>
    %c0_22 = arith.constant 0 : index
    %c0_23 = arith.constant 0 : index
    %28 = vector.load %arg10[%c0_22, %c0_23] : memref<8x8xf32, #tpu.memory_space<vmem>>, vector<8x8xf32>
    tpu.vector_store %arg10[%c0_22, %c0_23], %27 {strides = array<i32>} : memref<8x8xf32, #tpu.memory_space<vmem>>, vector<8x8xf32>,
    return
  }
  func.func @transform_0(%arg0: i32) -> (i32, i32) {
    %c0_i32 = arith.constant 0 : i32
    %c0_i32_0 = arith.constant 0 : i32
    return %arg0, %c0_i32 : i32, i32
  }
  func.func @transform_1(%arg0: i32) -> (i32, i32) {
    %c0_i32 = arith.constant 0 : i32
    %c0_i32_0 = arith.constant 0 : i32
    return %arg0, %c0_i32 : i32, i32
  }
  func.func @transform_2(%arg0: i32) -> (i32, i32) {
    %c0_i32 = arith.constant 0 : i32
    %c0_i32_0 = arith.constant 0 : i32
    %c0_i32_1 = arith.constant 0 : i32
    return %c0_i32, %c0_i32_0 : i32, i32
  }
  func.func @transform_3(%arg0: i32) -> (i32, i32) {
    %c0_i32 = arith.constant 0 : i32
    %c0_i32_0 = arith.constant 0 : i32
    %c0_i32_1 = arith.constant 0 : i32
    return %c0_i32, %c0_i32_0 : i32, i32
  }
  func.func @transform_4(%arg0: i32) -> (i32, i32) {
    %c0_i32 = arith.constant 0 : i32
    %c0_i32_0 = arith.constant 0 : i32
    %c0_i32_1 = arith.constant 0 : i32
    return %c0_i32, %c0_i32_0 : i32, i32
  }
  func.func @transform_5(%arg0: i32) -> (i32, i32) {
    %c0_i32 = arith.constant 0 : i32
    %c0_i32_0 = arith.constant 0 : i32
    %c0_i32_1 = arith.constant 0 : i32
    return %c0_i32, %c0_i32_0 : i32, i32
  }
  func.func @transform_6(%arg0: i32) -> (i32, i32) {
    %c0_i32 = arith.constant 0 : i32
    %c0_i32_0 = arith.constant 0 : i32
    %c0_i32_1 = arith.constant 0 : i32
    return %c0_i32, %c0_i32_0 : i32, i32
  }
  func.func @transform_7(%arg0: i32) -> (i32, i32) {
    %c0_i32 = arith.constant 0 : i32
    %c0_i32_0 = arith.constant 0 : i32
    %c0_i32_1 = arith.constant 0 : i32
    return %c0_i32, %c0_i32_0 : i32, i32
  }
  func.func @transform_8(%arg0: i32) -> (i32, i32) {
    %c0_i32 = arith.constant 0 : i32
    %c0_i32_0 = arith.constant 0 : i32
    %c0_i32_1 = arith.constant 0 : i32
    return %c0_i32, %c0_i32_0 : i32, i32
  }
  func.func @transform_9(%arg0: i32) -> (i32, i32) {
    %c0_i32 = arith.constant 0 : i32
    %c0_i32_0 = arith.constant 0 : i32
    return %arg0, %c0_i32 : i32, i32
  }
}

</mosaic_0001>

<llo_original>
// kernel: environment_model_forward.1
$region0: #{environment_model_forward.1}
  #allocation0 [shape = 'u32[]', space=smem, size = 0x4, offset = 0x4, fixed_abs, tag = 'smem constant byte address 0x4 - core index']
  #allocation1 [shape = 'u32[72,128]{1,0:T(1,128)}', space=vmem, size = 0x9000, scoped, tag = 'internal scratch']
  %s0 = inlined_call_operand.vmem [shape: f32[2,8], index: 0, kind: input, shape index: {}]
  %s1 = inlined_call_operand.hbm [shape: f32[2,4], index: 1, kind: input, shape index: {}]
  %s2 = inlined_call_operand.vmem [shape: bf16[8,128], index: 2, kind: input, shape index: {}]
  %s3 = inlined_call_operand.hbm [shape: bf16[4,128], index: 3, kind: input, shape index: {}]
  %s4 = inlined_call_operand.vmem [shape: f32[1,128], index: 4, kind: input, shape index: {}]
  %s5 = inlined_call_operand.vmem [shape: bf16[128,128], index: 5, kind: input, shape index: {}]
  %s6 = inlined_call_operand.hbm [shape: f32[1,128], index: 6, kind: input, shape index: {}]
  %s7 = inlined_call_operand.vmem [shape: bf16[128,8], index: 7, kind: input, shape index: {}]
  %s8 = inlined_call_operand.hbm [shape: f32[1,8], index: 8, kind: input, shape index: {}]
  %s9 = inlined_call_operand.hbm [shape: f32[2,8], index: 9, kind: output, shape index: {}]
  %s10 = sld [smem:[#allocation0]]
  $region62: #{environment_model_forward.1} parent=0
    _
  %s12 = ssub.s32 1, %s10
  %s13 = scalar_select 0, %s12, %s10
  $region1: #{environment_model_forward.1} parent=0
    #allocation2 [shape = 'u8[4096]{0}', space=vmem, size = 0x1000, scoped, tag = 'input window, operand 1, single buffered']
    #allocation3 [shape = 's32[1]{0}', space=sflag, size = 0x4, scoped, tag = 'scoped memory for environment_model_forward.1']
    #allocation4 [shape = 's32[1]{0}', space=sflag, size = 0x4, scoped, tag = 'scoped memory for environment_model_forward.1']
    #allocation5 [shape = 'u8[1024]{0}', space=vmem, size = 0x400, scoped, tag = 'input window, operand 3, single buffered']
    #allocation6 [shape = 's32[1]{0}', space=sflag, size = 0x4, scoped, tag = 'scoped memory for environment_model_forward.1']
    #allocation7 [shape = 'u8[512]{0}', space=vmem, size = 0x400, scoped, tag = 'input window, operand 6, single buffered']
    #allocation8 [shape = 'u8[512]{0}', space=vmem, size = 0x400, scoped, tag = 'input window, operand 8, single buffered']
    #allocation9 [shape = 's32[1]{0}', space=sflag, size = 0x4, scoped, tag = 'scoped memory for environment_model_forward.1']
    #allocation10 [shape = 'u8[4096]{0}', space=vmem, size = 0x1000, scoped, tag = 'output window, operand 0, single buffered']
    %14 = vsyncpa [#allocation3], 0
    %15 = vsyncpa [#allocation6], 0
    %16 = vsyncpa [#allocation9], 0
    %17 = vsyncpa [#allocation4], 0
    // Predicated region
    $region2: #{environment_model_forward.1} parent=1 // pred_check
      _
    $region3: #{environment_model_forward.1} parent=1 // pred_check_branch
      %19 = sbr.rel (0) target = $region5
    $region4: #{environment_model_forward.1} parent=1 // pred_region
      _
    $region5: #{environment_model_forward.1} parent=1 // pred_fallthru
      _
    // Predicated region
    $region6: #{environment_model_forward.1} parent=1 // pred_check
      _
    $region7: #{environment_model_forward.1} parent=1 // pred_check_branch
      %21 = sbr.rel (0) target = $region9
    $region8: #{environment_model_forward.1} parent=1 // pred_region
      %23 = vsyncadd [#allocation3], 96
      %s24 = sshll.u32 %s1, 4
      %s25 = int_to_ptr.hbm [resolvable:$true] %s24
      %s26 = sshll.u32 [#allocation2], 4
      %s27 = int_to_ptr.vmem [resolvable:$true] %s26
      %32 = dma.hbm_to_vmem [thread:$0]  %s25, 32, %s27, [#allocation3], 32, 32, 2
    $region9: #{environment_model_forward.1} parent=1 // pred_fallthru
      _
    // Predicated region
    $region10: #{environment_model_forward.1} parent=1 // pred_check
      _
    $region11: #{environment_model_forward.1} parent=1 // pred_check_branch
      %34 = sbr.rel (0) target = $region13
    $region12: #{environment_model_forward.1} parent=1 // pred_region
      _
    $region13: #{environment_model_forward.1} parent=1 // pred_fallthru
      _
    // Predicated region
    $region14: #{environment_model_forward.1} parent=1 // pred_check
      _
    $region15: #{environment_model_forward.1} parent=1 // pred_check_branch
      %36 = sbr.rel (0) target = $region17
    $region16: #{environment_model_forward.1} parent=1 // pred_region
      %38 = vsyncadd [#allocation6], 0
      %s40 = sshll.u32 %s3, 4
      %s41 = int_to_ptr.hbm [resolvable:$true] %s40
      %s42 = sshll.u32 [#allocation5], 4
      %s43 = int_to_ptr.vmem [resolvable:$true] %s42
      %45 = dma.hbm_to_vmem [thread:$0]  %s41, 32, %s43, [#allocation6]
    $region17: #{environment_model_forward.1} parent=1 // pred_fallthru
      _
    // Predicated region
    $region18: #{environment_model_forward.1} parent=1 // pred_check
      _
    $region19: #{environment_model_forward.1} parent=1 // pred_check_branch
      %47 = sbr.rel (0) target = $region21
    $region20: #{environment_model_forward.1} parent=1 // pred_region
      _
    $region21: #{environment_model_forward.1} parent=1 // pred_fallthru
      _
    // Predicated region
    $region22: #{environment_model_forward.1} parent=1 // pred_check
      _
    $region23: #{environment_model_forward.1} parent=1 // pred_check_branch
      %49 = sbr.rel (0) target = $region25
    $region24: #{environment_model_forward.1} parent=1 // pred_region
      _
    $region25: #{environment_model_forward.1} parent=1 // pred_fallthru
      _
    // Predicated region
    $region26: #{environment_model_forward.1} parent=1 // pred_check
      _
    $region27: #{environment_model_forward.1} parent=1 // pred_check_branch
      %51 = sbr.rel (0) target = $region29
    $region28: #{environment_model_forward.1} parent=1 // pred_region
      %53 = vsyncadd [#allocation6], 0
      %s55 = sshll.u32 %s6, 4
      %s56 = int_to_ptr.hbm [resolvable:$true] %s55
      %s57 = sshll.u32 [#allocation7], 4
      %s58 = int_to_ptr.vmem [resolvable:$true] %s57
      %60 = dma.hbm_to_vmem [thread:$0]  %s56, 16, %s58, [#allocation6]
    $region29: #{environment_model_forward.1} parent=1 // pred_fallthru
      _
    // Predicated region
    $region30: #{environment_model_forward.1} parent=1 // pred_check
      _
    $region31: #{environment_model_forward.1} parent=1 // pred_check_branch
      %62 = sbr.rel (0) target = $region33
    $region32: #{environment_model_forward.1} parent=1 // pred_region
      _
    $region33: #{environment_model_forward.1} parent=1 // pred_fallthru
      _
    // Predicated region
    $region34: #{environment_model_forward.1} parent=1 // pred_check
      _
    $region35: #{environment_model_forward.1} parent=1 // pred_check_branch
      %64 = sbr.rel (0) target = $region37
    $region36: #{environment_model_forward.1} parent=1 // pred_region
      %66 = vsyncadd [#allocation9], 0
      %s68 = sshll.u32 %s8, 4
      %s69 = int_to_ptr.hbm [resolvable:$true] %s68
      %s70 = sshll.u32 [#allocation8], 4
      %s71 = int_to_ptr.vmem [resolvable:$true] %s70
      %73 = dma.hbm_to_vmem [thread:$0]  %s69, 16, %s71, [#allocation9]
    $region37: #{environment_model_forward.1} parent=1 // pred_fallthru
      _
    // Predicated region
    $region38: #{environment_model_forward.1} parent=1 // pred_check
      _
    $region39: #{environment_model_forward.1} parent=1 // pred_check_branch
      %75 = sbr.rel (0) target = $region41
    $region40: #{environment_model_forward.1} parent=1 // pred_region
      %77 = dma.done [#allocation3], 128
    $region41: #{environment_model_forward.1} parent=1 // pred_fallthru
      _
    // Predicated region
    $region42: #{environment_model_forward.1} parent=1 // pred_check
      _
    $region43: #{environment_model_forward.1} parent=1 // pred_check_branch
      %79 = sbr.rel (0) target = $region45
    $region44: #{environment_model_forward.1} parent=1 // pred_region
      %81 = dma.done [#allocation6], 32
    $region45: #{environment_model_forward.1} parent=1 // pred_fallthru
      _
    // Predicated region
    $region46: #{environment_model_forward.1} parent=1 // pred_check
      _
    $region47: #{environment_model_forward.1} parent=1 // pred_check_branch
      %83 = sbr.rel (0) target = $region49
    $region48: #{environment_model_forward.1} parent=1 // pred_region
      %85 = dma.done [#allocation6], 16
    $region49: #{environment_model_forward.1} parent=1 // pred_fallthru
      _
    // Predicated region
    $region50: #{environment_model_forward.1} parent=1 // pred_check
      _
    $region51: #{environment_model_forward.1} parent=1 // pred_check_branch
      %87 = sbr.rel (0) target = $region53
    $region52: #{environment_model_forward.1} parent=1 // pred_region
      %89 = dma.done [#allocation9], 16
    $region53: #{environment_model_forward.1} parent=1 // pred_fallthru
      _
    %v91 = vld [vmem:[%s4] sm:$0x1]
    %v92 = vld [vmem:[#allocation7] sm:$0x1]
    %v93 = vld [vmem:[#allocation8] sm:$0x1]
    %v94 = vld [vmem:[%s0] sm:$0xff]
    %v95 = vpack.c.bf16 %v94, %v94
    %v96 = vld [vmem:[#allocation2] sm:$0xff]
    %v97 = vpack.c.bf16 %v96, %v96
    %v98 = vld [vmem:[%s2] sm:$0xf]
    %v99 = vld [vmem:[#allocation5] sm:$0x3]
    %vm100 = vcmask 31744
    %v102 = vsel %vm100, %v97, 0
    %vm104 = vcmask 1041408
    %v106 = vsel %vm104, %v99, 0
    %108 = vmatpush.bf16.msra.mxu0 0
    %109 = vmatpush.bf16.msra.mxu0 0
    %110 = vmatpush.bf16.msra.mxu0 0
    %111 = vmatpush.bf16.msra.mxu0 0
    %112 = vmatpush.bf16.msra.mxu0 0
    %113 = vmatpush.bf16.msra.mxu0 0
    %114 = vmatpush.bf16.msra.mxu0 0
    %115 = vmatpush.bf16.msra.mxu0 %v106
    %116 = vmatmul.bf16.gmra.mxu0 %v102
    %v117 = vpop.f32.mrf.mxu0
    %v118 = vadd.f32 0.0, %v117
    %v119 = vpop.f32.mrf.mxu0
    %120 = vdwg.mxu0
    %vm121 = vcmask 64512
    %v123 = vsel %vm121, %v95, 0
    %vm125 = vcmask 1043456
    %v127 = vsel %vm125, %v98, 0
    %129 = vmatpush.bf16.msra.mxu0 0
    %130 = vmatpush.bf16.msra.mxu0 0
    %131 = vmatpush.bf16.msra.mxu0 0
    %132 = vmatpush.bf16.msra.mxu0 0
    %133 = vmatpush.bf16.msra.mxu0 0
    %134 = vmatpush.bf16.msra.mxu0 0
    %135 = vmatpush.bf16.msra.mxu0 0
    %136 = vmatpush.bf16.msra.mxu0 %v127
    %137 = vmatmul.bf16.gmra.mxu0 %v123
    %v138 = vpop.f32.mrf.mxu0
    %v139 = vadd.f32 %v118, %v138
    %v140 = vpop.f32.mrf.mxu0
    %141 = vdwg.mxu0
    %v143 = vperm.slane %v91, 0
    %v145 = vadd.f32 %v139, %v143
    %v146 = vmax.f32 %v145, 0.0
    %v147 = vpack.c.bf16 %v146, %v146
    %v148 = vld [vmem:[%s5] sm:$0xf]
    %v149 = vld [vmem:[%s5 + $0x4] sm:$0xf]
    %v150 = vld [vmem:[%s5 + $0x8] sm:$0xf]
    %v151 = vld [vmem:[%s5 + $0xc] sm:$0xf]
    %v152 = vld [vmem:[%s5 + $0x10] sm:$0xf]
    %v153 = vld [vmem:[%s5 + $0x14] sm:$0xf]
    %v154 = vld [vmem:[%s5 + $0x18] sm:$0xf]
    %v155 = vld [vmem:[%s5 + $0x1c] sm:$0xf]
    %v156 = vld [vmem:[%s5 + $0x20] sm:$0xf]
    %v157 = vld [vmem:[%s5 + $0x24] sm:$0xf]
    %v158 = vld [vmem:[%s5 + $0x28] sm:$0xf]
    %v159 = vld [vmem:[%s5 + $0x2c] sm:$0xf]
    %v160 = vld [vmem:[%s5 + $0x30] sm:$0xf]
    %v161 = vld [vmem:[%s5 + $0x34] sm:$0xf]
    %v162 = vld [vmem:[%s5 + $0x38] sm:$0xf]
    %v163 = vld [vmem:[%s5 + $0x3c] sm:$0xf]
    %v165 = vperm.slane %v92, 0
    %v183 = vunpack.c.l.b16 %v148
    %v184 = vunpack.c.l.b16 %v149
    %v185 = vunpack.c.l.b16 %v150
    %v186 = vunpack.c.l.b16 %v151
    %v187 = vunpack.c.l.b16 %v152
    %v188 = vunpack.c.l.b16 %v153
    %v189 = vunpack.c.l.b16 %v154
    %v190 = vunpack.c.l.b16 %v155
    %v191 = vunpack.c.l.b16 %v156
    %v192 = vunpack.c.l.b16 %v157
    %v193 = vunpack.c.l.b16 %v158
    %v194 = vunpack.c.l.b16 %v159
    %v195 = vunpack.c.l.b16 %v160
    %v196 = vunpack.c.l.b16 %v161
    %v197 = vunpack.c.l.b16 %v162
    %v198 = vunpack.c.l.b16 %v163
    %v199 = vpack.c.b16 %v184, %v183
    %v200 = vpack.c.b16 %v186, %v185
    %v201 = vpack.c.b16 %v188, %v187
    %v202 = vpack.c.b16 %v190, %v189
    %v203 = vpack.c.b16 %v192, %v191
    %v204 = vpack.c.b16 %v194, %v193
    %v205 = vpack.c.b16 %v196, %v195
    %v206 = vpack.c.b16 %v198, %v197
    %215 = vmatpush.bf16.msra.mxu0 %v206
    %216 = vmatpush.bf16.msra.mxu0 %v205
    %217 = vmatpush.bf16.msra.mxu0 %v204
    %218 = vmatpush.bf16.msra.mxu0 %v203
    %219 = vmatpush.bf16.msra.mxu0 %v202
    %220 = vmatpush.bf16.msra.mxu0 %v201
    %221 = vmatpush.bf16.msra.mxu0 %v200
    %222 = vmatpush.bf16.msra.mxu0 %v199
    %223 = vmatmul.bf16.gmra.mxu0 %v147
    %v224 = vpop.f32.mrf.mxu0
    %v225 = vadd.f32 %v165, %v224
    %v226 = vpop.f32.mrf.mxu0
    %227 = vdwg.mxu0
    %v228 = vmax.f32 %v225, 0.0
    %v229 = vpack.c.bf16 %v228, %v228
    %v230 = vld [vmem:[%s7] sm:$0xf]
    %v231 = vld [vmem:[%s7 + $0x4] sm:$0xf]
    %v232 = vld [vmem:[%s7 + $0x8] sm:$0xf]
    %v233 = vld [vmem:[%s7 + $0xc] sm:$0xf]
    %v234 = vld [vmem:[%s7 + $0x10] sm:$0xf]
    %v235 = vld [vmem:[%s7 + $0x14] sm:$0xf]
    %v236 = vld [vmem:[%s7 + $0x18] sm:$0xf]
    %v237 = vld [vmem:[%s7 + $0x1c] sm:$0xf]
    %v238 = vld [vmem:[%s7 + $0x20] sm:$0xf]
    %v239 = vld [vmem:[%s7 + $0x24] sm:$0xf]
    %v240 = vld [vmem:[%s7 + $0x28] sm:$0xf]
    %v241 = vld [vmem:[%s7 + $0x2c] sm:$0xf]
    %v242 = vld [vmem:[%s7 + $0x30] sm:$0xf]
    %v243 = vld [vmem:[%s7 + $0x34] sm:$0xf]
    %v244 = vld [vmem:[%s7 + $0x38] sm:$0xf]
    %v245 = vld [vmem:[%s7 + $0x3c] sm:$0xf]
    %v247 = vperm.slane %v93, 0
    %v265 = vunpack.c.l.b16 %v230
    %v266 = vunpack.c.l.b16 %v231
    %v267 = vunpack.c.l.b16 %v232
    %v268 = vunpack.c.l.b16 %v233
    %v269 = vunpack.c.l.b16 %v234
    %v270 = vunpack.c.l.b16 %v235
    %v271 = vunpack.c.l.b16 %v236
    %v272 = vunpack.c.l.b16 %v237
    %v273 = vunpack.c.l.b16 %v238
    %v274 = vunpack.c.l.b16 %v239
    %v275 = vunpack.c.l.b16 %v240
    %v276 = vunpack.c.l.b16 %v241
    %v277 = vunpack.c.l.b16 %v242
    %v278 = vunpack.c.l.b16 %v243
    %v279 = vunpack.c.l.b16 %v244
    %v280 = vunpack.c.l.b16 %v245
    %v281 = vpack.c.b16 %v266, %v265
    %v282 = vpack.c.b16 %v268, %v267
    %v283 = vpack.c.b16 %v270, %v269
    %v284 = vpack.c.b16 %v272, %v271
    %v285 = vpack.c.b16 %v274, %v273
    %v286 = vpack.c.b16 %v276, %v275
    %v287 = vpack.c.b16 %v278, %v277
    %v288 = vpack.c.b16 %v280, %v279
    %297 = vmatpush.bf16.msra.mxu0 %v288
    %298 = vmatpush.bf16.msra.mxu0 %v287
    %299 = vmatpush.bf16.msra.mxu0 %v286
    %300 = vmatpush.bf16.msra.mxu0 %v285
    %301 = vmatpush.bf16.msra.mxu0 %v284
    %302 = vmatpush.bf16.msra.mxu0 %v283
    %303 = vmatpush.bf16.msra.mxu0 %v282
    %304 = vmatpush.bf16.msra.mxu0 %v281
    %305 = vmatmul.bf16.gmra.mxu0 %v229
    %v306 = vpop.f32.mrf.mxu0
    %v307 = vadd.f32 %v247, %v306
    %v308 = vpop.f32.mrf.mxu0
    %309 = vdwg.mxu0
    %310 = vst.msk [vmem:[#allocation10] sm:$0xff] %vm121, %v307
    // Predicated region
    $region54: #{environment_model_forward.1} parent=1 // pred_check
      _
    $region55: #{environment_model_forward.1} parent=1 // pred_check_branch
      %312 = sbr.rel (0) target = $region57
    $region56: #{environment_model_forward.1} parent=1 // pred_region
      %314 = vsyncadd [#allocation4], 96
      %s315 = sshll.u32 [#allocation10], 4
      %s316 = int_to_ptr.vmem [resolvable:$true] %s315
      %s317 = sshll.u32 %s9, 4
      %s318 = int_to_ptr.hbm [resolvable:$true] %s317
      %323 = dma.vmem_to_hbm [thread:$0]  %s316, 32, %s318, [#allocation4], 32, 32, 2
    $region57: #{environment_model_forward.1} parent=1 // pred_fallthru
      _
    // Predicated region
    $region58: #{environment_model_forward.1} parent=1 // pred_check
      _
    $region59: #{environment_model_forward.1} parent=1 // pred_check_branch
      %325 = sbr.rel (0) target = $region61
    $region60: #{environment_model_forward.1} parent=1 // pred_region
      %327 = dma.done [#allocation4], 128
    $region61: #{environment_model_forward.1} parent=1 // pred_fallthru
      _
    %328 = vsyncpa [#allocation3], 1
    %329 = vsyncpa [#allocation6], 1
    %330 = vsyncpa [#allocation9], 1
    %331 = vsyncpa [#allocation4], 1

</llo_original>
